<compile_context>
chip_gen: v5e
topology: v5e:2x2
jax: 0.10.0
libtpu: 0.0.40
codegen_flags: <defaults>
</compile_context>

<pallas_src>
import functools
import math

import jax
import jax.numpy as jnp
from jax.experimental import pallas as pl
from jax.experimental.pallas import tpu as pltpu


_VMEM = pl.BlockSpec(memory_space=pltpu.MemorySpace.VMEM)


def _round_up(x, m):
    return ((x + m - 1) // m) * m


# ---------------------------------------------------------------------------
# Fused forward kernel (single gridless pallas_call; everything VMEM-resident)
# ---------------------------------------------------------------------------

def _generator_fused_kernel(
    x_ref, texte_ref, patch_ref, mask_ref, w_slab_ref, b_slab_ref, out_ref,
    *, batch, seq, latent_dims, embed_dims, num_heads,
    negative_slope, bn_eps, num_gen_layers, wmeta, bmeta):
    B, S, E, H = batch, seq, embed_dims, num_heads
    BS = B * S
    E2 = 2 * E
    head_dim = E // H
    f32 = jnp.float32

    def W(name):                                   # static slice of the weight slab
        r0, fi, fo = wmeta[name]
        return w_slab_ref[r0:r0 + fi, 0:fo]

    b_all = b_slab_ref[...]                        # one load; rows sliced in-register

    def Bv(name):
        r0, width = bmeta[name]
        return b_all[r0:r0 + 1, 0:width]

    def act(y):
        if negative_slope == 0.0:
            return jnp.maximum(y, 0.0)             # ReLU
        return jnp.where(y > 0, y, negative_slope * y)

    # ---- encoders ----------------------------------------------------------
    # text rows are already replicated to B*S by the wrapper (layout plumbing),
    # so the query never needs an in-kernel (B,) -> (B*S,) broadcast.
    t_e = jnp.dot(texte_ref[...], W("text_w"), preferred_element_type=f32) + Bv("text_b")   # (BS, E)
    patches2d = patch_ref[...].reshape(BS, patch_ref.shape[2])
    pe = jnp.dot(patches2d, W("patch_w"), preferred_element_type=f32) + Bv("patch_b")        # (BS, E)

    # ---- q / kv projections (softmax scale pre-folded into wq2/bq2) ---------
    # wq2 = [Wq*scale | 0] : q in lanes [0,E), lanes [E,2E) exactly 0
    # wkv = [Wk | Wv]      : k in lanes [0,E), v in lanes [E,2E)
    q2e = jnp.dot(t_e, W("wq2"), preferred_element_type=f32) + Bv("bq2")                     # (BS, 2E)
    kv = jnp.dot(pe, W("wkv"), preferred_element_type=f32) + Bv("bkv")                       # (BS, 2E)

    # ---- per-head selector matrices (in-kernel iota; no extra DMA'd inputs) -
    e_idx = jax.lax.broadcasted_iota(jnp.int32, (E2, H), 0)
    h_idx = jax.lax.broadcasted_iota(jnp.int32, (E2, H), 1)
    sel_k = jnp.where((e_idx >= h_idx * head_dim)
                      & (e_idx < (h_idx + 1) * head_dim), 1.0, 0.0)          # (2E, H)
    h_idx_t = jax.lax.broadcasted_iota(jnp.int32, (H, E2), 0)
    e_idx_t = jax.lax.broadcasted_iota(jnp.int32, (H, E2), 1)
    sel_v_t = jnp.where((e_idx_t >= E + h_idx_t * head_dim)
                        & (e_idx_t < E + (h_idx_t + 1) * head_dim), 1.0, 0.0)  # (H, 2E)

    # ---- attention ----------------------------------------------------------
    # scores[bs,h] = q_h(b) . k_h(bs)   (v-half of q2e is zero so it drops out)
    scores = jnp.dot(q2e * kv, sel_k, preferred_element_type=f32) + mask_ref[...]   # (BS, H)

    # Per-batch softmax over the S keys: each batch occupies exactly one f32
    # sublane tile (S = 8), so the slices are tile-aligned and the max/sum are
    # plain sublane reductions (no MXU). Masked keys carry -1e9 -> exp == 0; if
    # every key of a batch is masked the max cancels the -1e9 and the softmax
    # degenerates to uniform (no NaN/inf).
    attn_blocks = []
    for b in range(B):
        s_b = scores[b * S:(b + 1) * S, :]                          # (S, H)
        mx_b = jnp.max(s_b, axis=0, keepdims=True)                  # (1, H)
        ex_b = jnp.exp(s_b - mx_b)
        den_b = jnp.sum(ex_b, axis=0, keepdims=True)                # (1, H)
        inv_b = pl.reciprocal(den_b, approx=False)                  # exact, 4 elems/batch
        attn_blocks.append(ex_b * inv_b)
    attn = jnp.concatenate(attn_blocks, axis=0) if B > 1 else attn_blocks[0]   # (BS, H)

    # expand per-head weights into the v-half lanes, weight the values, and
    # segment-sum over S with sublane reductions + a tiny where-chain (no matmul)
    attn_e = jnp.dot(attn, sel_v_t, preferred_element_type=f32)      # (BS, 2E), k-half 0
    ave = attn_e * kv                                                # (BS, 2E)
    row_b = jax.lax.broadcasted_iota(jnp.int32, (B, 1), 0)
    ctx = jnp.zeros((B, E2), f32)
    for b in range(B):
        ctx_b = jnp.sum(ave[b * S:(b + 1) * S, :], axis=0, keepdims=True)   # (1, 2E)
        ctx = jnp.where(row_b == b, ctx_b, ctx)                              # (B, 2E)
    # wo2 = [[0],[Wo]] consumes only the v-half of the context
    attn_out = jnp.dot(ctx, W("wo2"), preferred_element_type=f32) + Bv("bo")  # (B, E)

    # ---- BatchNorm1d (training mode: biased batch statistics) ---------------
    mean = jnp.mean(attn_out, axis=0, keepdims=True)
    var = jnp.mean((attn_out - mean) ** 2, axis=0, keepdims=True)
    bn = (attn_out - mean) * jax.lax.rsqrt(var + bn_eps) * Bv("bn_gamma") + Bv("bn_beta")

    # ---- generator MLP -------------------------------------------------------
    # First block consumes concat([x, bn], dim=1), implemented as a split matmul.
    # TODO(synk): is_bn=True generator blocks (BatchNorm inside each MLP block) are
    # not implemented; the module default is is_bn=False.
    r0, fi, fo = wmeta["gen_w0"]
    h = jnp.dot(x_ref[...], w_slab_ref[r0:r0 + latent_dims, 0:fo],
                preferred_element_type=f32)
    h = h + jnp.dot(bn, w_slab_ref[r0 + latent_dims:r0 + fi, 0:fo],
                    preferred_element_type=f32)
    h = act(h + Bv("gen_b0"))
    for i in range(1, num_gen_layers):
        h = act(jnp.dot(h, W(f"gen_w{i}"), preferred_element_type=f32) + Bv(f"gen_b{i}"))
    out = jnp.dot(h, W("final_w"), preferred_element_type=f32) + Bv("final_b")
    out_ref[...] = out.astype(out_ref.dtype)


# ---------------------------------------------------------------------------
# Wrapper
# ---------------------------------------------------------------------------

def make_generator_forward(layout, *, negative_slope=0.0, bn_eps=1e-5):
    wmeta, bmeta = layout["wmeta"], layout["bmeta"]
    E = layout["embed_dims"]
    H = layout["num_heads"]
    latent = layout["latent_dims"]
    n_gen = layout["num_gen_layers"]
    out_dim = layout["out_dim"]

    def forward(params, x, text_embedding, patches, padding_mask):
        B, S, _P = patches.shape
        BS = B * S
        Td = text_embedding.shape[1]

        # wrapper-side layout plumbing (tiny XLA ops): replicate the text rows per key
        # position (so the kernel needs no q broadcast) and turn the bool key-padding
        # mask into a compact additive column.
        text_e = jnp.broadcast_to(text_embedding[:, None, :].astype(jnp.float32),
                                  (B, S, Td)).reshape(BS, Td)
        mask_add = jnp.where(padding_mask, -1e9, 0.0).astype(jnp.float32).reshape(BS, 1)

        kernel = functools.partial(
            _generator_fused_kernel,
            batch=B, seq=S, latent_dims=latent, embed_dims=E, num_heads=H,
            negative_slope=negative_slope, bn_eps=bn_eps,
            num_gen_layers=n_gen, wmeta=wmeta, bmeta=bmeta)

        # advisory scheduling hint for XLA
        rows_for = {"text_w": BS, "patch_w": BS, "wq2": BS, "wkv": BS}
        flops = 0
        for name, (_r0, fi, fo) in wmeta.items():
            flops += 2 * rows_for.get(name, B) * fi * fo
        flops += 2 * 2 * BS * (2 * E) * H          # the two head-selector matmuls
        bytes_accessed = 4 * (x.size + text_e.size + patches.size + mask_add.size
                              + params["w_slab"].size + params["b_slab"].size
                              + B * out_dim)
        cost = pl.CostEstimate(flops=flops, transcendentals=BS * H,
                               bytes_accessed=bytes_accessed)

        # fully-fused design keeps everything VMEM-resident; stay well under the
        # smallest physical VMEM (64 MiB on v7x, vs 128 MiB on v5e/v6e).
        # TODO(synk): if embed/generator dims grow, split the MLP into a K-tiled grid
        # and add a batch grid axis with dimension_semantics=("parallel",) so v7x's
        # second TensorCore is used.
        assert bytes_accessed < 32 * 1024 * 1024, "fused kernel would exceed VMEM headroom"

        return pl.pallas_call(
            kernel,
            out_shape=jax.ShapeDtypeStruct((B, out_dim), jnp.float32),
            in_specs=[_VMEM] * 6,
            out_specs=_VMEM,
            cost_estimate=cost,
        )(x.astype(jnp.float32), text_e, patches.astype(jnp.float32), mask_add,
          params["w_slab"], params["b_slab"])

    return jax.jit(forward)


# ---------------------------------------------------------------------------
# Parameter init: deterministic; everything packed into one weight slab + one
# bias slab (weights pre-transposed to (in, out), q/k/v/out packed, scale folded).
# ---------------------------------------------------------------------------

def _linear_init(key, fan_in, fan_out):
    kw, kb = jax.random.split(key)
    bound = 1.0 / math.sqrt(fan_in)
    w = jax.random.uniform(kw, (fan_in, fan_out), jnp.float32, -bound, bound)
    b = jax.random.uniform(kb, (fan_out,), jnp.float32, -bound, bound)
    return w, b


def init_generator_params(key, latent_dims, embedding_dims, generator_dims,
                          text_embedding_dims, patches_embedding_dims, num_heads=4):
    E = embedding_dims
    head_dim = E // num_heads
    scale = 1.0 / math.sqrt(head_dim)
    gen_hidden = list(generator_dims[:-1])
    n_gen = len(gen_hidden)
    keys = jax.random.split(key, 7 + n_gen)

    text_w, text_b = _linear_init(keys[0], text_embedding_dims, E)
    patch_w, patch_b = _linear_init(keys[1], patches_embedding_dims, E)
    wq, bq = _linear_init(keys[2], E, E)
    wk, bk = _linear_init(keys[3], E, E)
    wv, bv = _linear_init(keys[4], E, E)
    wo, bo = _linear_init(keys[5], E, E)
    zeros_w = jnp.zeros((E, E), jnp.float32)
    zeros_b = jnp.zeros((E,), jnp.float32)
    # MultiheadAttention packing (done once at init):
    #   wq2 = [Wq*scale | 0]  (E, 2E)   q in lanes [0,E); 1/sqrt(head_dim) folded in
    #   wkv = [Wk | Wv]       (E, 2E)   k in lanes [0,E), v in lanes [E,2E)
    #   wo2 = [[0],[Wo]]      (2E, E)   consumes only the v-half of the context
    wq2 = jnp.concatenate([wq * scale, zeros_w], axis=1)
    bq2 = jnp.concatenate([bq * scale, zeros_b], axis=0)
    wkv = jnp.concatenate([wk, wv], axis=1)
    bkv = jnp.concatenate([bk, bv], axis=0)
    wo2 = jnp.concatenate([zeros_w, wo], axis=0)

    w_items = [("text_w", text_w), ("patch_w", patch_w),
               ("wq2", wq2), ("wkv", wkv), ("wo2", wo2)]
    b_items = [("text_b", text_b), ("patch_b", patch_b), ("bq2", bq2),
               ("bkv", bkv), ("bo", bo),
               ("bn_gamma", jnp.ones((E,), jnp.float32)),    # PyTorch BatchNorm1d defaults
               ("bn_beta", jnp.zeros((E,), jnp.float32))]

    dims = [latent_dims + E] + gen_hidden
    for i in range(n_gen):
        gw, gb = _linear_init(keys[6 + i], dims[i], dims[i + 1])
        w_items.append((f"gen_w{i}", gw))
        b_items.append((f"gen_b{i}", gb))
    final_w, final_b = _linear_init(keys[6 + n_gen], generator_dims[-2], generator_dims[-1])
    w_items.append(("final_w", final_w))
    b_items.append(("final_b", final_b))

    # weight slab: every block starts on an 8-sublane boundary, lanes padded to 128
    lane_w = max(128, _round_up(max(w.shape[1] for _, w in w_items), 128))
    wmeta, blocks, row = {}, [], 0
    for name, w in w_items:
        fi, fo = w.shape
        wmeta[name] = (row, fi, fo)
        rp = _round_up(fi, 8)
        blocks.append(jnp.zeros((rp, lane_w), jnp.float32).at[:fi, :fo].set(w))
        row += rp
    w_slab = jnp.concatenate(blocks, axis=0)

    # bias slab: one row per bias, padded to 8 rows total multiple
    bmeta, brows = {}, []
    for i, (name, b) in enumerate(b_items):
        bmeta[name] = (i, b.shape[0])
        brows.append(jnp.zeros((1, lane_w), jnp.float32).at[0, :b.shape[0]].set(b))
    pad = _round_up(len(b_items), 8) - len(b_items)
    if pad:
        brows.append(jnp.zeros((pad, lane_w), jnp.float32))
    b_slab = jnp.concatenate(brows, axis=0)

    params = {"w_slab": w_slab, "b_slab": b_slab}
    layout = dict(wmeta=wmeta, bmeta=bmeta, num_gen_layers=n_gen,
                  latent_dims=latent_dims, embed_dims=E, num_heads=num_heads,
                  out_dim=generator_dims[-1])
    return params, layout


# ---------------------------------------------------------------------------
# Main
# ---------------------------------------------------------------------------

if __name__ == "__main__":
    B, S = 2, 8
    latent_dims = 16
    embedding_dims = 32
    generator_dims = [64, 48, 32]
    text_embedding_dims = 48
    patches_embedding_dims = 96

    key = jax.random.PRNGKey(0)
    kp, kx, kt, kpat = jax.random.split(key, 4)

    params, layout = init_generator_params(
        kp, latent_dims, embedding_dims, generator_dims,
        text_embedding_dims, patches_embedding_dims)

    x = jax.random.normal(kx, (B, latent_dims), jnp.float32)
    text_embedding = jax.random.normal(kt, (B, text_embedding_dims), jnp.float32)
    patches = jax.random.normal(kpat, (B, S, patches_embedding_dims), jnp.float32)
    # True = padded patch (ignored by attention). Batch 0: none padded; batch 1: last 3.
    lengths = jnp.array([[S], [5]], dtype=jnp.int32)
    padding_mask = jnp.arange(S)[None, :] >= lengths                  # (B, S) bool

    fwd = make_generator_forward(layout)
    out = jax.block_until_ready(fwd(params, x, text_embedding, patches, padding_mask))

    assert out.shape == (B, generator_dims[-1]), out.shape
    assert out.dtype == jnp.float32
    assert bool(jnp.all(jnp.isfinite(out)))
    print("KERNEL_OK")
</pallas_src>

<mosaic_0001>
module attributes {stable_mosaic.version = 11 : i64} {
  func.func @_generator_fused_kernel(%arg0: memref<2x16xf32, #tpu.memory_space<vmem>>, %arg1: memref<16x48xf32, #tpu.memory_space<vmem>>, %arg2: memref<2x8x96xf32, #tpu.memory_space<vmem>>, %arg3: memref<16x1xf32, #tpu.memory_space<vmem>>, %arg4: memref<432x128xf32, #tpu.memory_space<vmem>>, %arg5: memref<16x128xf32, #tpu.memory_space<vmem>>, %arg6: memref<2x32xf32, #tpu.memory_space<vmem>>) attributes {dimension_semantics = [], scalar_prefetch = 0 : i64, scratch_operands = 0 : i64, tpu.core_type = #tpu.core_type<tc>} {
    %c0 = arith.constant 0 : index
    %c0_0 = arith.constant 0 : index
    %0 = vector.load %arg5[%c0, %c0_0] : memref<16x128xf32, #tpu.memory_space<vmem>>, vector<16x128xf32>
    %c0_1 = arith.constant 0 : index
    %c0_2 = arith.constant 0 : index
    %1 = vector.load %arg1[%c0_1, %c0_2] : memref<16x48xf32, #tpu.memory_space<vmem>>, vector<16x48xf32>
    %c0_3 = arith.constant 0 : index
    %c0_4 = arith.constant 0 : index
    %2 = vector.load %arg4[%c0_3, %c0_4] : memref<432x128xf32, #tpu.memory_space<vmem>>, vector<48x32xf32>
    %cst = arith.constant dense<0.000000e+00> : vector<16x32xf32>
    %3 = tpu.matmul %1, %2, %cst {dimension_numbers = #tpu.dot_dimension_numbers<[1], [0], [0], [1], [0, 0, 1, 1], [], []>} : vector<16x48xf32>, vector<48x32xf32>, vector<16x32xf32> -> vector<16x32xf32>
    %4 = vector.extract_strided_slice %0 {offsets = [0, 0], sizes = [1, 32], strides = [1, 1]} : vector<16x128xf32> to vector<1x32xf32>
    %5 = vector.broadcast %4 : vector<1x32xf32> to vector<16x32xf32>
    %6 = arith.addf %3, %5 : vector<16x32xf32>
    %c0_5 = arith.constant 0 : index
    %c0_6 = arith.constant 0 : index
    %c0_7 = arith.constant 0 : index
    %7 = vector.load %arg2[%c0_5, %c0_6, %c0_7] : memref<2x8x96xf32, #tpu.memory_space<vmem>>, vector<2x8x96xf32>
    %8 = vector.shape_cast %7 : vector<2x8x96xf32> to vector<16x96xf32>
    %c48 = arith.constant 48 : index
    %c0_8 = arith.constant 0 : index
    %9 = vector.load %arg4[%c48, %c0_8] : memref<432x128xf32, #tpu.memory_space<vmem>>, vector<96x32xf32>
    %cst_9 = arith.constant dense<0.000000e+00> : vector<16x32xf32>
    %10 = tpu.matmul %8, %9, %cst_9 {dimension_numbers = #tpu.dot_dimension_numbers<[1], [0], [0], [1], [0, 0, 1, 1], [], []>} : vector<16x96xf32>, vector<96x32xf32>, vector<16x32xf32> -> vector<16x32xf32>
    %11 = vector.extract_strided_slice %0 {offsets = [1, 0], sizes = [1, 32], strides = [1, 1]} : vector<16x128xf32> to vector<1x32xf32>
    %12 = vector.broadcast %11 : vector<1x32xf32> to vector<16x32xf32>
    %13 = arith.addf %10, %12 : vector<16x32xf32>
    %c144 = arith.constant 144 : index
    %c0_10 = arith.constant 0 : index
    %14 = vector.load %arg4[%c144, %c0_10] : memref<432x128xf32, #tpu.memory_space<vmem>>, vector<32x64xf32>
    %cst_11 = arith.constant dense<0.000000e+00> : vector<16x64xf32>
    %15 = tpu.matmul %6, %14, %cst_11 {dimension_numbers = #tpu.dot_dimension_numbers<[1], [0], [0], [1], [0, 0, 1, 1], [], []>} : vector<16x32xf32>, vector<32x64xf32>, vector<16x64xf32> -> vector<16x64xf32>
    %16 = vector.extract_strided_slice %0 {offsets = [2, 0], sizes = [1, 64], strides = [1, 1]} : vector<16x128xf32> to vector<1x64xf32>
    %17 = vector.broadcast %16 : vector<1x64xf32> to vector<16x64xf32>
    %18 = arith.addf %15, %17 : vector<16x64xf32>
    %c176 = arith.constant 176 : index
    %c0_12 = arith.constant 0 : index
    %19 = vector.load %arg4[%c176, %c0_12] : memref<432x128xf32, #tpu.memory_space<vmem>>, vector<32x64xf32>
    %cst_13 = arith.constant dense<0.000000e+00> : vector<16x64xf32>
    %20 = tpu.matmul %13, %19, %cst_13 {dimension_numbers = #tpu.dot_dimension_numbers<[1], [0], [0], [1], [0, 0, 1, 1], [], []>} : vector<16x32xf32>, vector<32x64xf32>, vector<16x64xf32> -> vector<16x64xf32>
    %21 = vector.extract_strided_slice %0 {offsets = [3, 0], sizes = [1, 64], strides = [1, 1]} : vector<16x128xf32> to vector<1x64xf32>
    %22 = vector.broadcast %21 : vector<1x64xf32> to vector<16x64xf32>
    %23 = arith.addf %20, %22 : vector<16x64xf32>
    %24 = tpu.iota {dimensions = array<i32: 0>} : vector<64x4xi32>
    %25 = tpu.iota {dimensions = array<i32: 1>} : vector<64x4xi32>
    %c8_i32 = arith.constant 8 : i32
    %26 = vector.broadcast %c8_i32 : i32 to vector<64x4xi32>
    %27 = arith.muli %25, %26 : vector<64x4xi32>
    %28 = arith.cmpi sge, %24, %27 : vector<64x4xi32>
    %c1_i32 = arith.constant 1 : i32
    %29 = vector.broadcast %c1_i32 : i32 to vector<64x4xi32>
    %30 = arith.addi %25, %29 : vector<64x4xi32>
    %c8_i32_14 = arith.constant 8 : i32
    %31 = vector.broadcast %c8_i32_14 : i32 to vector<64x4xi32>
    %32 = arith.muli %30, %31 : vector<64x4xi32>
    %33 = arith.cmpi slt, %24, %32 : vector<64x4xi32>
    %34 = arith.andi %28, %33 : vector<64x4xi1>
    %cst_15 = arith.constant 1.000000e+00 : f32
    %cst_16 = arith.constant 0.000000e+00 : f32
    %35 = vector.broadcast %cst_15 : f32 to vector<64x4xf32>
    %36 = vector.broadcast %cst_16 : f32 to vector<64x4xf32>
    %37 = arith.select %34, %35, %36 : vector<64x4xi1>, vector<64x4xf32>
    %38 = tpu.iota {dimensions = array<i32: 0>} : vector<4x64xi32>
    %39 = tpu.iota {dimensions = array<i32: 1>} : vector<4x64xi32>
    %c8_i32_17 = arith.constant 8 : i32
    %40 = vector.broadcast %c8_i32_17 : i32 to vector<4x64xi32>
    %41 = arith.muli %38, %40 : vector<4x64xi32>
    %c32_i32 = arith.constant 32 : i32
    %42 = vector.broadcast %c32_i32 : i32 to vector<4x64xi32>
    %43 = arith.addi %42, %41 : vector<4x64xi32>
    %44 = arith.cmpi sge, %39, %43 : vector<4x64xi32>
    %c1_i32_18 = arith.constant 1 : i32
    %45 = vector.broadcast %c1_i32_18 : i32 to vector<4x64xi32>
    %46 = arith.addi %38, %45 : vector<4x64xi32>
    %c8_i32_19 = arith.constant 8 : i32
    %47 = vector.broadcast %c8_i32_19 : i32 to vector<4x64xi32>
    %48 = arith.muli %46, %47 : vector<4x64xi32>
    %c32_i32_20 = arith.constant 32 : i32
    %49 = vector.broadcast %c32_i32_20 : i32 to vector<4x64xi32>
    %50 = arith.addi %49, %48 : vector<4x64xi32>
    %51 = arith.cmpi slt, %39, %50 : vector<4x64xi32>
    %52 = arith.andi %44, %51 : vector<4x64xi1>
    %cst_21 = arith.constant 1.000000e+00 : f32
    %cst_22 = arith.constant 0.000000e+00 : f32
    %53 = vector.broadcast %cst_21 : f32 to vector<4x64xf32>
    %54 = vector.broadcast %cst_22 : f32 to vector<4x64xf32>
    %55 = arith.select %52, %53, %54 : vector<4x64xi1>, vector<4x64xf32>
    %56 = arith.mulf %18, %23 : vector<16x64xf32>
    %cst_23 = arith.constant dense<0.000000e+00> : vector<16x4xf32>
    %57 = tpu.matmul %56, %37, %cst_23 {dimension_numbers = #tpu.dot_dimension_numbers<[1], [0], [0], [1], [0, 0, 1, 1], [], []>} : vector<16x64xf32>, vector<64x4xf32>, vector<16x4xf32> -> vector<16x4xf32>
    %c0_24 = arith.constant 0 : index
    %c0_25 = arith.constant 0 : index
    %58 = vector.load %arg3[%c0_24, %c0_25] : memref<16x1xf32, #tpu.memory_space<vmem>>, vector<16x1xf32>
    %59 = vector.broadcast %58 : vector<16x1xf32> to vector<16x4xf32>
    %60 = arith.addf %57, %59 : vector<16x4xf32>
    %61 = vector.extract_strided_slice %60 {offsets = [0, 0], sizes = [8, 4], strides = [1, 1]} : vector<16x4xf32> to vector<8x4xf32>
    %cst_26 = arith.constant dense<0xFF800000> : vector<4xf32>
    %62 = vector.multi_reduction <maximumf>, %61, %cst_26 [0] : vector<8x4xf32> to vector<4xf32>
    %63 = vector.shape_cast %62 : vector<4xf32> to vector<1x4xf32>
    %64 = vector.broadcast %63 : vector<1x4xf32> to vector<8x4xf32>
    %65 = arith.subf %61, %64 : vector<8x4xf32>
    %66 = math.exp %65 : vector<8x4xf32>
    %cst_27 = arith.constant dense<0.000000e+00> : vector<4xf32>
    %67 = vector.multi_reduction <add>, %66, %cst_27 [0] : vector<8x4xf32> to vector<4xf32>
    %68 = vector.shape_cast %67 : vector<4xf32> to vector<1x4xf32>
    %69 = tpu.reciprocal %68 : vector<1x4xf32> -> vector<1x4xf32>
    %70 = vector.broadcast %69 : vector<1x4xf32> to vector<8x4xf32>
    %71 = arith.mulf %66, %70 : vector<8x4xf32>
    %72 = vector.extract_strided_slice %60 {offsets = [8, 0], sizes = [8, 4], strides = [1, 1]} : vector<16x4xf32> to vector<8x4xf32>
    %cst_28 = arith.constant dense<0xFF800000> : vector<4xf32>
    %73 = vector.multi_reduction <maximumf>, %72, %cst_28 [0] : vector<8x4xf32> to vector<4xf32>
    %74 = vector.shape_cast %73 : vector<4xf32> to vector<1x4xf32>
    %75 = vector.broadcast %74 : vector<1x4xf32> to vector<8x4xf32>
    %76 = arith.subf %72, %75 : vector<8x4xf32>
    %77 = math.exp %76 : vector<8x4xf32>
    %cst_29 = arith.constant dense<0.000000e+00> : vector<4xf32>
    %78 = vector.multi_reduction <add>, %77, %cst_29 [0] : vector<8x4xf32> to vector<4xf32>
    %79 = vector.shape_cast %78 : vector<4xf32> to vector<1x4xf32>
    %80 = tpu.reciprocal %79 : vector<1x4xf32> -> vector<1x4xf32>
    %81 = vector.broadcast %80 : vector<1x4xf32> to vector<8x4xf32>
    %82 = arith.mulf %77, %81 : vector<8x4xf32>
    %83 = tpu.concatenate %71, %82 in 0 : vector<8x4xf32>, vector<8x4xf32> -> vector<16x4xf32>
    %cst_30 = arith.constant dense<0.000000e+00> : vector<16x64xf32>
    %84 = tpu.matmul %83, %55, %cst_30 {dimension_numbers = #tpu.dot_dimension_numbers<[1], [0], [0], [1], [0, 0, 1, 1], [], []>} : vector<16x4xf32>, vector<4x64xf32>, vector<16x64xf32> -> vector<16x64xf32>
    %85 = arith.mulf %84, %23 : vector<16x64xf32>
    %86 = tpu.iota {dimensions = array<i32: 0>} : vector<2x1xi32>
    %cst_31 = arith.constant 0.000000e+00 : f32
    %87 = vector.broadcast %cst_31 : f32 to vector<2x64xf32>
    %88 = vector.extract_strided_slice %85 {offsets = [0, 0], sizes = [8, 64], strides = [1, 1]} : vector<16x64xf32> to vector<8x64xf32>
    %cst_32 = arith.constant dense<0.000000e+00> : vector<64xf32>
    %89 = vector.multi_reduction <add>, %88, %cst_32 [0] : vector<8x64xf32> to vector<64xf32>
    %90 = vector.shape_cast %89 : vector<64xf32> to vector<1x64xf32>
    %c0_i32 = arith.constant 0 : i32
    %91 = vector.broadcast %c0_i32 : i32 to vector<2x1xi32>
    %92 = arith.cmpi eq, %86, %91 : vector<2x1xi32>
    %93 = vector.shape_cast %92 : vector<2x1xi1> to vector<2x1xi1>
    %94 = vector.broadcast %93 : vector<2x1xi1> to vector<2x64xi1>
    %95 = vector.shape_cast %90 : vector<1x64xf32> to vector<1x64xf32>
    %96 = vector.broadcast %95 : vector<1x64xf32> to vector<2x64xf32>
    %97 = arith.select %94, %96, %87 : vector<2x64xi1>, vector<2x64xf32>
    %98 = vector.extract_strided_slice %85 {offsets = [8, 0], sizes = [8, 64], strides = [1, 1]} : vector<16x64xf32> to vector<8x64xf32>
    %cst_33 = arith.constant dense<0.000000e+00> : vector<64xf32>
    %99 = vector.multi_reduction <add>, %98, %cst_33 [0] : vector<8x64xf32> to vector<64xf32>
    %100 = vector.shape_cast %99 : vector<64xf32> to vector<1x64xf32>
    %c1_i32_34 = arith.constant 1 : i32
    %101 = vector.broadcast %c1_i32_34 : i32 to vector<2x1xi32>
    %102 = arith.cmpi eq, %86, %101 : vector<2x1xi32>
    %103 = vector.shape_cast %102 : vector<2x1xi1> to vector<2x1xi1>
    %104 = vector.broadcast %103 : vector<2x1xi1> to vector<2x64xi1>
    %105 = vector.shape_cast %100 : vector<1x64xf32> to vector<1x64xf32>
    %106 = vector.broadcast %105 : vector<1x64xf32> to vector<2x64xf32>
    %107 = arith.select %104, %106, %97 : vector<2x64xi1>, vector<2x64xf32>
    %c208 = arith.constant 208 : index
    %c0_35 = arith.constant 0 : index
    %108 = vector.load %arg4[%c208, %c0_35] : memref<432x128xf32, #tpu.memory_space<vmem>>, vector<64x32xf32>
    %cst_36 = arith.constant dense<0.000000e+00> : vector<2x32xf32>
    %109 = tpu.matmul %107, %108, %cst_36 {dimension_numbers = #tpu.dot_dimension_numbers<[1], [0], [0], [1], [0, 0, 1, 1], [], []>} : vector<2x64xf32>, vector<64x32xf32>, vector<2x32xf32> -> vector<2x32xf32>
    %110 = vector.extract_strided_slice %0 {offsets = [4, 0], sizes = [1, 32], strides = [1, 1]} : vector<16x128xf32> to vector<1x32xf32>
    %111 = vector.broadcast %110 : vector<1x32xf32> to vector<2x32xf32>
    %112 = arith.addf %109, %111 : vector<2x32xf32>
    %cst_37 = arith.constant dense<0.000000e+00> : vector<32xf32>
    %113 = vector.multi_reduction <add>, %112, %cst_37 [0] : vector<2x32xf32> to vector<32xf32>
    %114 = vector.shape_cast %113 : vector<32xf32> to vector<1x32xf32>
    %cst_38 = arith.constant 2.000000e+00 : f32
    %115 = vector.broadcast %cst_38 : f32 to vector<1x32xf32>
    %116 = arith.divf %114, %115 : vector<1x32xf32>
    %117 = vector.broadcast %116 : vector<1x32xf32> to vector<2x32xf32>
    %118 = arith.subf %112, %117 : vector<2x32xf32>
    %119 = arith.mulf %118, %118 : vector<2x32xf32>
    %cst_39 = arith.constant dense<0.000000e+00> : vector<32xf32>
    %120 = vector.multi_reduction <add>, %119, %cst_39 [0] : vector<2x32xf32> to vector<32xf32>
    %121 = vector.shape_cast %120 : vector<32xf32> to vector<1x32xf32>
    %cst_40 = arith.constant 2.000000e+00 : f32
    %122 = vector.broadcast %cst_40 : f32 to vector<1x32xf32>
    %123 = arith.divf %121, %122 : vector<1x32xf32>
    %124 = vector.broadcast %116 : vector<1x32xf32> to vector<2x32xf32>
    %125 = arith.subf %112, %124 : vector<2x32xf32>
    %cst_41 = arith.constant 9.99999974E-6 : f32
    %126 = vector.broadcast %cst_41 : f32 to vector<1x32xf32>
    %127 = arith.addf %123, %126 : vector<1x32xf32>
    %128 = math.rsqrt %127 : vector<1x32xf32>
    %129 = vector.broadcast %128 : vector<1x32xf32> to vector<2x32xf32>
    %130 = arith.mulf %125, %129 : vector<2x32xf32>
    %131 = vector.extract_strided_slice %0 {offsets = [5, 0], sizes = [1, 32], strides = [1, 1]} : vector<16x128xf32> to vector<1x32xf32>
    %132 = vector.broadcast %131 : vector<1x32xf32> to vector<2x32xf32>
    %133 = arith.mulf %130, %132 : vector<2x32xf32>
    %134 = vector.extract_strided_slice %0 {offsets = [6, 0], sizes = [1, 32], strides = [1, 1]} : vector<16x128xf32> to vector<1x32xf32>
    %135 = vector.broadcast %134 : vector<1x32xf32> to vector<2x32xf32>
    %136 = arith.addf %133, %135 : vector<2x32xf32>
    %c0_42 = arith.constant 0 : index
    %c0_43 = arith.constant 0 : index
    %137 = vector.load %arg0[%c0_42, %c0_43] : memref<2x16xf32, #tpu.memory_space<vmem>>, vector<2x16xf32>
    %c272 = arith.constant 272 : index
    %c0_44 = arith.constant 0 : index
    %138 = vector.load %arg4[%c272, %c0_44] : memref<432x128xf32, #tpu.memory_space<vmem>>, vector<16x64xf32>
    %cst_45 = arith.constant dense<0.000000e+00> : vector<2x64xf32>
    %139 = tpu.matmul %137, %138, %cst_45 {dimension_numbers = #tpu.dot_dimension_numbers<[1], [0], [0], [1], [0, 0, 1, 1], [], []>} : vector<2x16xf32>, vector<16x64xf32>, vector<2x64xf32> -> vector<2x64xf32>
    %c288 = arith.constant 288 : index
    %c0_46 = arith.constant 0 : index
    %140 = vector.load %arg4[%c288, %c0_46] : memref<432x128xf32, #tpu.memory_space<vmem>>, vector<32x64xf32>
    %cst_47 = arith.constant dense<0.000000e+00> : vector<2x64xf32>
    %141 = tpu.matmul %136, %140, %cst_47 {dimension_numbers = #tpu.dot_dimension_numbers<[1], [0], [0], [1], [0, 0, 1, 1], [], []>} : vector<2x32xf32>, vector<32x64xf32>, vector<2x64xf32> -> vector<2x64xf32>
    %142 = arith.addf %139, %141 : vector<2x64xf32>
    %143 = vector.extract_strided_slice %0 {offsets = [7, 0], sizes = [1, 64], strides = [1, 1]} : vector<16x128xf32> to vector<1x64xf32>
    %144 = vector.broadcast %143 : vector<1x64xf32> to vector<2x64xf32>
    %145 = arith.addf %142, %144 : vector<2x64xf32>
    %cst_48 = arith.constant 0.000000e+00 : f32
    %146 = vector.broadcast %cst_48 : f32 to vector<2x64xf32>
    %147 = arith.maximumf %145, %146 : vector<2x64xf32>
    %c320 = arith.constant 320 : index
    %c0_49 = arith.constant 0 : index
    %148 = vector.load %arg4[%c320, %c0_49] : memref<432x128xf32, #tpu.memory_space<vmem>>, vector<64x48xf32>
    %cst_50 = arith.constant dense<0.000000e+00> : vector<2x48xf32>
    %149 = tpu.matmul %147, %148, %cst_50 {dimension_numbers = #tpu.dot_dimension_numbers<[1], [0], [0], [1], [0, 0, 1, 1], [], []>} : vector<2x64xf32>, vector<64x48xf32>, vector<2x48xf32> -> vector<2x48xf32>
    %150 = vector.extract_strided_slice %0 {offsets = [8, 0], sizes = [1, 48], strides = [1, 1]} : vector<16x128xf32> to vector<1x48xf32>
    %151 = vector.broadcast %150 : vector<1x48xf32> to vector<2x48xf32>
    %152 = arith.addf %149, %151 : vector<2x48xf32>
    %cst_51 = arith.constant 0.000000e+00 : f32
    %153 = vector.broadcast %cst_51 : f32 to vector<2x48xf32>
    %154 = arith.maximumf %152, %153 : vector<2x48xf32>
    %c384 = arith.constant 384 : index
    %c0_52 = arith.constant 0 : index
    %155 = vector.load %arg4[%c384, %c0_52] : memref<432x128xf32, #tpu.memory_space<vmem>>, vector<48x32xf32>
    %cst_53 = arith.constant dense<0.000000e+00> : vector<2x32xf32>
    %156 = tpu.matmul %154, %155, %cst_53 {dimension_numbers = #tpu.dot_dimension_numbers<[1], [0], [0], [1], [0, 0, 1, 1], [], []>} : vector<2x48xf32>, vector<48x32xf32>, vector<2x32xf32> -> vector<2x32xf32>
    %157 = vector.extract_strided_slice %0 {offsets = [9, 0], sizes = [1, 32], strides = [1, 1]} : vector<16x128xf32> to vector<1x32xf32>
    %158 = vector.broadcast %157 : vector<1x32xf32> to vector<2x32xf32>
    %159 = arith.addf %156, %158 : vector<2x32xf32>
    %c0_54 = arith.constant 0 : index
    %c0_55 = arith.constant 0 : index
    %160 = vector.load %arg6[%c0_54, %c0_55] : memref<2x32xf32, #tpu.memory_space<vmem>>, vector<2x32xf32>
    tpu.vector_store %arg6[%c0_54, %c0_55], %159 {strides = array<i32>} : memref<2x32xf32, #tpu.memory_space<vmem>>, vector<2x32xf32>,
    return
  }
}

</mosaic_0001>

<llo_original>
// kernel: forward.1
$region0: #{forward.1}
  #allocation0 [shape = 'u32[]', space=smem, size = 0x4, offset = 0x4, fixed_abs, tag = 'smem constant byte address 0x4 - core index']
  #allocation1 [shape = 'u32[72,128]{1,0:T(1,128)}', space=vmem, size = 0x9000, scoped, tag = 'internal scratch']
  %s0 = inlined_call_operand.vmem [shape: f32[2,16], index: 0, kind: input, shape index: {}]
  %s1 = inlined_call_operand.vmem [shape: f32[16,48], index: 1, kind: input, shape index: {}]
  %s2 = inlined_call_operand.vmem [shape: f32[2,8,96], index: 2, kind: input, shape index: {}]
  %s3 = inlined_call_operand.vmem [shape: f32[16,1], index: 3, kind: input, shape index: {}]
  %s4 = inlined_call_operand.hbm [shape: f32[432,128], index: 4, kind: input, shape index: {}]
  %s5 = inlined_call_operand.vmem [shape: f32[16,128], index: 5, kind: input, shape index: {}]
  %s6 = inlined_call_operand.hbm [shape: f32[2,32], index: 6, kind: output, shape index: {}]
  %s7 = sld [smem:[#allocation0]]
  $region38: #{forward.1} parent=0
    _
  %s9 = ssub.s32 1, %s7
  %s10 = scalar_select 0, %s9, %s7
  $region1: #{forward.1} parent=0
    #allocation2 [shape = 'u8[221184]{0}', space=vmem, size = 0x36000, scoped, tag = 'input window, operand 4, single buffered']
    #allocation3 [shape = 's32[1]{0}', space=sflag, size = 0x4, scoped, tag = 'scoped memory for forward.1']
    #allocation4 [shape = 's32[1]{0}', space=sflag, size = 0x4, scoped, tag = 'scoped memory for forward.1']
    #allocation5 [shape = 'u8[1024]{0}', space=vmem, size = 0x400, scoped, tag = 'output window, operand 0, single buffered']
    %11 = vsyncpa [#allocation3], 0
    %12 = vsyncpa [#allocation4], 0
    // Predicated region
    $region2: #{forward.1} parent=1 // pred_check
      _
    $region3: #{forward.1} parent=1 // pred_check_branch
      %14 = sbr.rel (0) target = $region5
    $region4: #{forward.1} parent=1 // pred_region
      _
    $region5: #{forward.1} parent=1 // pred_fallthru
      _
    // Predicated region
    $region6: #{forward.1} parent=1 // pred_check
      _
    $region7: #{forward.1} parent=1 // pred_check_branch
      %16 = sbr.rel (0) target = $region9
    $region8: #{forward.1} parent=1 // pred_region
      _
    $region9: #{forward.1} parent=1 // pred_fallthru
      _
    // Predicated region
    $region10: #{forward.1} parent=1 // pred_check
      _
    $region11: #{forward.1} parent=1 // pred_check_branch
      %18 = sbr.rel (0) target = $region13
    $region12: #{forward.1} parent=1 // pred_region
      _
    $region13: #{forward.1} parent=1 // pred_fallthru
      _
    // Predicated region
    $region14: #{forward.1} parent=1 // pred_check
      _
    $region15: #{forward.1} parent=1 // pred_check_branch
      %20 = sbr.rel (0) target = $region17
    $region16: #{forward.1} parent=1 // pred_region
      _
    $region17: #{forward.1} parent=1 // pred_fallthru
      _
    // Predicated region
    $region18: #{forward.1} parent=1 // pred_check
      _
    $region19: #{forward.1} parent=1 // pred_check_branch
      %22 = sbr.rel (0) target = $region21
    $region20: #{forward.1} parent=1 // pred_region
      %24 = vsyncadd [#allocation3], 0
      %s25 = sshll.u32 %s4, 4
      %s26 = int_to_ptr.hbm [resolvable:$true] %s25
      %s27 = sshll.u32 [#allocation2], 4
      %s28 = int_to_ptr.vmem [resolvable:$true] %s27
      %33 = dma.hbm_to_vmem [thread:$0]  %s26, 6912, %s28, [#allocation3], 128, 128, 8
    $region21: #{forward.1} parent=1 // pred_fallthru
      _
    // Predicated region
    $region22: #{forward.1} parent=1 // pred_check
      _
    $region23: #{forward.1} parent=1 // pred_check_branch
      %35 = sbr.rel (0) target = $region25
    $region24: #{forward.1} parent=1 // pred_region
      _
    $region25: #{forward.1} parent=1 // pred_fallthru
      _
    // Predicated region
    $region26: #{forward.1} parent=1 // pred_check
      _
    $region27: #{forward.1} parent=1 // pred_check_branch
      %37 = sbr.rel (0) target = $region29
    $region28: #{forward.1} parent=1 // pred_region
      %39 = dma.done [#allocation3], 6912
    $region29: #{forward.1} parent=1 // pred_fallthru
      _
    %v40 = vld [vmem:[%s5] sm:$0xff]
    %v41 = vld [vmem:[%s5 + $0x8] sm:$0xff]
    %v42 = vld [vmem:[%s1] sm:$0xff]
    %v43 = vld [vmem:[%s1 + $0x8] sm:$0xff]
    %v44 = vld [vmem:[#allocation2] sm:$0xff]
    %v45 = vld [vmem:[#allocation2 + $0x8] sm:$0xff]
    %v46 = vld [vmem:[#allocation2 + $0x10] sm:$0xff]
    %v47 = vld [vmem:[#allocation2 + $0x18] sm:$0xff]
    %v48 = vld [vmem:[#allocation2 + $0x20] sm:$0xff]
    %v49 = vld [vmem:[#allocation2 + $0x28] sm:$0xff]
    %v50 = vperm.slane %v40, 0
    %vm51 = vcmask 392192
    %v53 = vsel %vm51, %v42, 0
    %v56 = vsel %vm51, %v43, 0
    %58 = vmatpush.msra.mxu0 0.0
    %59 = vmatpush.msra.mxu0 0.0
    %60 = vmatpush.msra.mxu0 0.0
    %61 = vmatpush.msra.mxu0 0.0
    %62 = vmatpush.msra.mxu0 0.0
    %63 = vmatpush.msra.mxu0 0.0
    %64 = vmatpush.msra.mxu0 0.0
    %65 = vmatpush.msra.mxu0 0.0
    %66 = vmatpush.msra.mxu0 0.0
    %67 = vmatpush.msra.mxu0 0.0
    %68 = vmatpush.msra.mxu0 %v49
    %69 = vmatpush.msra.mxu0 %v48
    %70 = vmatpush.msra.mxu0 %v47
    %71 = vmatpush.msra.mxu0 %v46
    %72 = vmatpush.msra.mxu0 %v45
    %73 = vmatpush.msra.mxu0 %v44
    %74 = vmatmul.f32.gmra.mxu0 %v53
    %v75 = vpop.f32.mrf.mxu0
    %v76 = vadd.f32 %v50, %v75
    %77 = vmatmul.f32.gmra.mxu0 %v56
    %v78 = vpop.f32.mrf.mxu0
    %v79 = vadd.f32 %v50, %v78
    %80 = vdwg.mxu0
    %v81 = vld [vmem:[%s2] sm:$0xff]
    %v82 = vld [vmem:[%s2 + $0x8] sm:$0xff]
    %v83 = vld [vmem:[#allocation2 + $0x30] sm:$0xff]
    %v84 = vld [vmem:[#allocation2 + $0x38] sm:$0xff]
    %v85 = vld [vmem:[#allocation2 + $0x40] sm:$0xff]
    %v86 = vld [vmem:[#allocation2 + $0x48] sm:$0xff]
    %v87 = vld [vmem:[#allocation2 + $0x50] sm:$0xff]
    %v88 = vld [vmem:[#allocation2 + $0x58] sm:$0xff]
    %v89 = vld [vmem:[#allocation2 + $0x60] sm:$0xff]
    %v90 = vld [vmem:[#allocation2 + $0x68] sm:$0xff]
    %v91 = vld [vmem:[#allocation2 + $0x70] sm:$0xff]
    %v92 = vld [vmem:[#allocation2 + $0x78] sm:$0xff]
    %v93 = vld [vmem:[#allocation2 + $0x80] sm:$0xff]
    %v94 = vld [vmem:[#allocation2 + $0x88] sm:$0xff]
    %v95 = vperm.slane %v40, 1
    %vm96 = vcmask 785408
    %v98 = vsel %vm96, %v81, 0
    %v101 = vsel %vm96, %v82, 0
    %103 = vmatpush.msra.mxu0 0.0
    %104 = vmatpush.msra.mxu0 0.0
    %105 = vmatpush.msra.mxu0 0.0
    %106 = vmatpush.msra.mxu0 0.0
    %107 = vmatpush.msra.mxu0 %v94
    %108 = vmatpush.msra.mxu0 %v93
    %109 = vmatpush.msra.mxu0 %v92
    %110 = vmatpush.msra.mxu0 %v91
    %111 = vmatpush.msra.mxu0 %v90
    %112 = vmatpush.msra.mxu0 %v89
    %113 = vmatpush.msra.mxu0 %v88
    %114 = vmatpush.msra.mxu0 %v87
    %115 = vmatpush.msra.mxu0 %v86
    %116 = vmatpush.msra.mxu0 %v85
    %117 = vmatpush.msra.mxu0 %v84
    %118 = vmatpush.msra.mxu0 %v83
    %119 = vmatmul.f32.gmra.mxu0 %v98
    %v120 = vpop.f32.mrf.mxu0
    %v121 = vadd.f32 %v95, %v120
    %122 = vmatmul.f32.gmra.mxu0 %v101
    %v123 = vpop.f32.mrf.mxu0
    %v124 = vadd.f32 %v95, %v123
    %125 = vdwg.mxu0
    %v126 = vld [vmem:[#allocation2 + $0x90] sm:$0xff]
    %v127 = vld [vmem:[#allocation2 + $0x98] sm:$0xff]
    %v128 = vld [vmem:[#allocation2 + $0xa0] sm:$0xff]
    %v129 = vld [vmem:[#allocation2 + $0xa8] sm:$0xff]
    %v130 = vperm.slane %v40, 2
    %vm131 = vcmask 261120
    %v133 = vsel %vm131, %v76, 0
    %v136 = vsel %vm131, %v79, 0
    %138 = vmatpush.msra.mxu0 0.0
    %139 = vmatpush.msra.mxu0 0.0
    %140 = vmatpush.msra.mxu0 0.0
    %141 = vmatpush.msra.mxu0 0.0
    %142 = vmatpush.msra.mxu0 0.0
    %143 = vmatpush.msra.mxu0 0.0
    %144 = vmatpush.msra.mxu0 0.0
    %145 = vmatpush.msra.mxu0 0.0
    %146 = vmatpush.msra.mxu0 0.0
    %147 = vmatpush.msra.mxu0 0.0
    %148 = vmatpush.msra.mxu0 0.0
    %149 = vmatpush.msra.mxu0 0.0
    %150 = vmatpush.msra.mxu0 %v129
    %151 = vmatpush.msra.mxu0 %v128
    %152 = vmatpush.msra.mxu0 %v127
    %153 = vmatpush.msra.mxu0 %v126
    %154 = vmatmul.f32.gmra.mxu0 %v133
    %v155 = vpop.f32.mrf.mxu0
    %v156 = vadd.f32 %v130, %v155
    %157 = vmatmul.f32.gmra.mxu0 %v136
    %v158 = vpop.f32.mrf.mxu0
    %v159 = vadd.f32 %v130, %v158
    %160 = vdwg.mxu0
    %v161 = vld [vmem:[#allocation2 + $0xb0] sm:$0xff]
    %v162 = vld [vmem:[#allocation2 + $0xb8] sm:$0xff]
    %v163 = vld [vmem:[#allocation2 + $0xc0] sm:$0xff]
    %v164 = vld [vmem:[#allocation2 + $0xc8] sm:$0xff]
    %v165 = vperm.slane %v40, 3
    %v167 = vsel %vm131, %v121, 0
    %v170 = vsel %vm131, %v124, 0
    %172 = vmatpush.msra.mxu0 0.0
    %173 = vmatpush.msra.mxu0 0.0
    %174 = vmatpush.msra.mxu0 0.0
    %175 = vmatpush.msra.mxu0 0.0
    %176 = vmatpush.msra.mxu0 0.0
    %177 = vmatpush.msra.mxu0 0.0
    %178 = vmatpush.msra.mxu0 0.0
    %179 = vmatpush.msra.mxu0 0.0
    %180 = vmatpush.msra.mxu0 0.0
    %181 = vmatpush.msra.mxu0 0.0
    %182 = vmatpush.msra.mxu0 0.0
    %183 = vmatpush.msra.mxu0 0.0
    %184 = vmatpush.msra.mxu0 %v164
    %185 = vmatpush.msra.mxu0 %v163
    %186 = vmatpush.msra.mxu0 %v162
    %187 = vmatpush.msra.mxu0 %v161
    %188 = vmatmul.f32.gmra.mxu0 %v167
    %v189 = vpop.f32.mrf.mxu0
    %v190 = vadd.f32 %v165, %v189
    %191 = vmatmul.f32.gmra.mxu0 %v170
    %v192 = vpop.f32.mrf.mxu0
    %v193 = vadd.f32 %v165, %v192
    %194 = vdwg.mxu0
    %v195 = vlaneseq
    %v196 = vshrl.u32 %v195, 7
    %v197 = vadd.s32 %v196, 8
    %v198 = vadd.s32 %v196, 16
    %v199 = vadd.s32 %v196, 24
    %v200 = vadd.s32 %v196, 32
    %v201 = vadd.s32 %v196, 40
    %v202 = vadd.s32 %v196, 48
    %v203 = vadd.s32 %v196, 56
    %v204 = vlaneseq
    %v205 = vand.u32 %v204, 127
    %v206 = vmul.u32 %v205, 8
    %vm207 = vcmp.ge.s32.totalorder %v196, %v206
    %vm208 = vcmp.ge.s32.totalorder %v197, %v206
    %vm209 = vcmp.ge.s32.totalorder %v198, %v206
    %vm210 = vcmp.ge.s32.totalorder %v199, %v206
    %vm211 = vcmp.ge.s32.totalorder %v200, %v206
    %vm212 = vcmp.ge.s32.totalorder %v201, %v206
    %vm213 = vcmp.ge.s32.totalorder %v202, %v206
    %vm214 = vcmp.ge.s32.totalorder %v203, %v206
    %v215 = vadd.s32 %v205, 1
    %v216 = vmul.u32 %v215, 8
    %vm217 = vcmp.lt.s32.totalorder %v196, %v216
    %vm218 = vcmp.lt.s32.totalorder %v197, %v216
    %vm219 = vcmp.lt.s32.totalorder %v198, %v216
    %vm220 = vcmp.lt.s32.totalorder %v199, %v216
    %vm221 = vcmp.lt.s32.totalorder %v200, %v216
    %vm222 = vcmp.lt.s32.totalorder %v201, %v216
    %vm223 = vcmp.lt.s32.totalorder %v202, %v216
    %vm224 = vcmp.lt.s32.totalorder %v203, %v216
    %vm225 = vmand %vm207, %vm217
    %vm226 = vmand %vm208, %vm218
    %vm227 = vmand %vm209, %vm219
    %vm228 = vmand %vm210, %vm220
    %vm229 = vmand %vm211, %vm221
    %vm230 = vmand %vm212, %vm222
    %vm231 = vmand %vm213, %vm223
    %vm232 = vmand %vm214, %vm224
    %v233 = vsel %vm225, 1.0, 0.0
    %v234 = vsel %vm226, 1.0, 0.0
    %v235 = vsel %vm227, 1.0, 0.0
    %v236 = vsel %vm228, 1.0, 0.0
    %v237 = vsel %vm229, 1.0, 0.0
    %v238 = vsel %vm230, 1.0, 0.0
    %v239 = vsel %vm231, 1.0, 0.0
    %v240 = vsel %vm232, 1.0, 0.0
    %v241 = vmul.u32 %v196, 8
    %v242 = vadd.s32 %v241, 32
    %vm243 = vcmp.ge.s32.totalorder %v205, %v242
    %v244 = vadd.s32 %v196, 1
    %v245 = vmul.u32 %v244, 8
    %v246 = vadd.s32 %v245, 32
    %vm247 = vcmp.lt.s32.totalorder %v205, %v246
    %vm248 = vmand %vm243, %vm247
    %v249 = vsel %vm248, 1.0, 0.0
    %v250 = vmul.f32 %v156, %v190
    %v251 = vmul.f32 %v159, %v193
    %v252 = vld [vmem:[%s3] sm:$0xff]
    %v253 = vld [vmem:[%s3 + $0x8] sm:$0xff]
    %255 = vset.pattern.permute.xlu0 0
    %256 = vperm.xlu0 %255, %v252
    %v257 = vpop.permute.xlu0 %256
    %260 = vset.pattern.permute.xlu0 0
    %261 = vperm.xlu0 %260, %v253
    %v262 = vpop.permute.xlu0 %261
    %vm264 = vcmask 523264
    %v266 = vsel %vm264, %v250, 0
    %v269 = vsel %vm264, %v251, 0
    %271 = vmatpush.msra.mxu0 0.0
    %272 = vmatpush.msra.mxu0 0.0
    %273 = vmatpush.msra.mxu0 0.0
    %274 = vmatpush.msra.mxu0 0.0
    %275 = vmatpush.msra.mxu0 0.0
    %276 = vmatpush.msra.mxu0 0.0
    %277 = vmatpush.msra.mxu0 0.0
    %278 = vmatpush.msra.mxu0 0.0
    %279 = vmatpush.msra.mxu0 %v240
    %280 = vmatpush.msra.mxu0 %v239
    %281 = vmatpush.msra.mxu0 %v238
    %282 = vmatpush.msra.mxu0 %v237
    %283 = vmatpush.msra.mxu0 %v236
    %284 = vmatpush.msra.mxu0 %v235
    %285 = vmatpush.msra.mxu0 %v234
    %286 = vmatpush.msra.mxu0 %v233
    %287 = vmatmul.f32.gmra.mxu0 %v266
    %v288 = vpop.f32.mrf.mxu0
    %v289 = vadd.f32 %v257, %v288
    %290 = vmatmul.f32.gmra.mxu0 %v269
    %v291 = vpop.f32.mrf.mxu0
    %v292 = vadd.f32 %v262, %v291
    %293 = vdwg.mxu0
    %vm294 = vcmask 31744
    %v295 = vsel %vm294, %v289, -inf
    %v296 = vrot.slane %v295, 4
    %v297 = vmax.f32 %v295, %v296
    %v298 = vrot.slane %v297, 2
    %v299 = vmax.f32 %v297, %v298
    %v300 = vrot.slane %v299, 1
    %v301 = vmax.f32 %v299, %v300
    %v302 = vsub.f32 %v289, %v301
    %v303 = vmul.f32 %v302, 1.442695
    %v304 = vpow.pop %v303
    %v305 = vsel %vm294, %v304, 0.0
    %v306 = vrot.slane %v305, 4
    %v307 = vadd.f32 %v305, %v306
    %v308 = vrot.slane %v307, 2
    %v309 = vadd.f32 %v307, %v308
    %v310 = vrot.slane %v309, 1
    %v311 = vadd.f32 %v309, %v310
    %v312 = vrcp.pop %v311
    %v313 = vmul.f32 %v311, %v312
    %v314 = vsub.f32 1.0, %v313
    %v315 = vmul.f32 %v312, %v314
    %v316 = vadd.f32 %v312, %v315
    %vm317 = vweird.f32 %v311
    %vm318 = vweird.f32 %v312
    %vm319 = vmor %vm317, %vm318
    %v320 = vsel %vm319, %v312, %v316
    %v321 = vand.u32 2147483647, %v311
    %vm322 = vcmp.eq.f32.partialorder %v321, 8.507059e+37
    %v323 = vand.u32 %v311, 2147483648
    %v324 = vor.u32 1.1754944e-38, %v323
    %v325 = vsel %vm322, %v324, %v320
    %v326 = vmul.f32 %v304, %v325
    %v327 = vsel %vm294, %v292, -inf
    %v328 = vrot.slane %v327, 4
    %v329 = vmax.f32 %v327, %v328
    %v330 = vrot.slane %v329, 2
    %v331 = vmax.f32 %v329, %v330
    %v332 = vrot.slane %v331, 1
    %v333 = vmax.f32 %v331, %v332
    %v334 = vsub.f32 %v292, %v333
    %v335 = vmul.f32 %v334, 1.442695
    %v336 = vpow.pop %v335
    %v337 = vsel %vm294, %v336, 0.0
    %v338 = vrot.slane %v337, 4
    %v339 = vadd.f32 %v337, %v338
    %v340 = vrot.slane %v339, 2
    %v341 = vadd.f32 %v339, %v340
    %v342 = vrot.slane %v341, 1
    %v343 = vadd.f32 %v341, %v342
    %v344 = vrcp.pop %v343
    %v345 = vmul.f32 %v343, %v344
    %v346 = vsub.f32 1.0, %v345
    %v347 = vmul.f32 %v344, %v346
    %v348 = vadd.f32 %v344, %v347
    %vm349 = vweird.f32 %v343
    %vm350 = vweird.f32 %v344
    %vm351 = vmor %vm349, %vm350
    %v352 = vsel %vm351, %v344, %v348
    %v353 = vand.u32 2147483647, %v343
    %vm354 = vcmp.eq.f32.partialorder %v353, 8.507059e+37
    %v355 = vand.u32 %v343, 2147483648
    %v356 = vor.u32 1.1754944e-38, %v355
    %v357 = vsel %vm354, %v356, %v352
    %v358 = vmul.f32 %v336, %v357
    %v360 = vsel %vm294, %v326, 0
    %v363 = vsel %vm294, %v358, 0
    %vm365 = vcmask 1043456
    %v367 = vsel %vm365, %v249, 0
    %369 = vmatpush.msra.mxu0 0.0
    %370 = vmatpush.msra.mxu0 0.0
    %371 = vmatpush.msra.mxu0 0.0
    %372 = vmatpush.msra.mxu0 0.0
    %373 = vmatpush.msra.mxu0 0.0
    %374 = vmatpush.msra.mxu0 0.0
    %375 = vmatpush.msra.mxu0 0.0
    %376 = vmatpush.msra.mxu0 0.0
    %377 = vmatpush.msra.mxu0 0.0
    %378 = vmatpush.msra.mxu0 0.0
    %379 = vmatpush.msra.mxu0 0.0
    %380 = vmatpush.msra.mxu0 0.0
    %381 = vmatpush.msra.mxu0 0.0
    %382 = vmatpush.msra.mxu0 0.0
    %383 = vmatpush.msra.mxu0 0.0
    %384 = vmatpush.msra.mxu0 %v367
    %385 = vmatmul.f32.gmra.mxu0 %v360
    %v386 = vpop.f32.mrf.mxu0
    %v387 = vadd.f32 0.0, %v386
    %388 = vmatmul.f32.gmra.mxu0 %v363
    %v389 = vpop.f32.mrf.mxu0
    %v390 = vadd.f32 0.0, %v389
    %391 = vdwg.mxu0
    %v392 = vmul.f32 %v387, %v190
    %v393 = vmul.f32 %v390, %v193
    %v394 = vsel %vm264, %v392, 0.0
    %v395 = vrot.slane %v394, 4
    %v396 = vadd.f32 %v394, %v395
    %v397 = vrot.slane %v396, 2
    %v398 = vadd.f32 %v396, %v397
    %v399 = vrot.slane %v398, 1
    %v400 = vadd.f32 %v398, %v399
    %vm401 = vcmp.eq.s32.totalorder %v196, 0
    %v402 = vsel %vm401, 1, 0
    %vm403 = vcmp.eq.s32.totalorder %v402, 1
    %v404 = vsel %vm403, %v400, 0.0
    %v405 = vsel %vm264, %v393, 0.0
    %v406 = vrot.slane %v405, 4
    %v407 = vadd.f32 %v405, %v406
    %v408 = vrot.slane %v407, 2
    %v409 = vadd.f32 %v407, %v408
    %v410 = vrot.slane %v409, 1
    %v411 = vadd.f32 %v409, %v410
    %vm412 = vcmp.eq.s32.totalorder %v196, 1
    %v413 = vsel %vm412, 1, 0
    %vm414 = vcmp.eq.s32.totalorder %v413, 1
    %v415 = vsel %vm414, %v411, %v404
    %v416 = vld [vmem:[#allocation2 + $0xd0] sm:$0xff]
    %v417 = vld [vmem:[#allocation2 + $0xd8] sm:$0xff]
    %v418 = vld [vmem:[#allocation2 + $0xe0] sm:$0xff]
    %v419 = vld [vmem:[#allocation2 + $0xe8] sm:$0xff]
    %v420 = vld [vmem:[#allocation2 + $0xf0] sm:$0xff]
    %v421 = vld [vmem:[#allocation2 + $0xf8] sm:$0xff]
    %v422 = vld [vmem:[#allocation2 + $0x100] sm:$0xff]
    %v423 = vld [vmem:[#allocation2 + $0x108] sm:$0xff]
    %v424 = vperm.slane %v40, 4
    %v426 = vsel %vm264, %v415, 0
    %428 = vmatpush.msra.mxu0 0.0
    %429 = vmatpush.msra.mxu0 0.0
    %430 = vmatpush.msra.mxu0 0.0
    %431 = vmatpush.msra.mxu0 0.0
    %432 = vmatpush.msra.mxu0 0.0
    %433 = vmatpush.msra.mxu0 0.0
    %434 = vmatpush.msra.mxu0 0.0
    %435 = vmatpush.msra.mxu0 0.0
    %436 = vmatpush.msra.mxu0 %v423
    %437 = vmatpush.msra.mxu0 %v422
    %438 = vmatpush.msra.mxu0 %v421
    %439 = vmatpush.msra.mxu0 %v420
    %440 = vmatpush.msra.mxu0 %v419
    %441 = vmatpush.msra.mxu0 %v418
    %442 = vmatpush.msra.mxu0 %v417
    %443 = vmatpush.msra.mxu0 %v416
    %444 = vmatmul.f32.gmra.mxu0 %v426
    %v445 = vpop.f32.mrf.mxu0
    %v446 = vadd.f32 %v424, %v445
    %447 = vdwg.mxu0
    %vm448 = vcmask 254976
    %v449 = vsel %vm448, %v446, 0.0
    %v450 = vrot.slane %v449, 4
    %v451 = vadd.f32 %v449, %v450
    %v452 = vrot.slane %v451, 2
    %v453 = vadd.f32 %v451, %v452
    %v454 = vrot.slane %v453, 1
    %v455 = vadd.f32 %v453, %v454
    %v456 = vrcp.pop 2.0
    %v457 = vmul.f32 2.0, %v456
    %v458 = vsub.f32 1.0, %v457
    %v459 = vmul.f32 %v456, %v458
    %v460 = vadd.f32 %v456, %v459
    %vm461 = vweird.f32 %v456
    %v462 = vsel %vm461, %v456, %v460
    %v463 = vmul.f32 %v455, %v462
    %v464 = vsub.f32 %v446, %v463
    %v465 = vmul.f32 %v464, %v464
    %v466 = vsel %vm448, %v465, 0.0
    %v467 = vrot.slane %v466, 4
    %v468 = vadd.f32 %v466, %v467
    %v469 = vrot.slane %v468, 2
    %v470 = vadd.f32 %v468, %v469
    %v471 = vrot.slane %v470, 1
    %v472 = vadd.f32 %v470, %v471
    %v473 = vmul.f32 %v472, %v462
    %v474 = vadd.f32 %v473, 1e-05
    %v475 = vrsqrt.pop %v474
    %v476 = vmul.f32 %v475, %v474
    %v477 = vmul.f32 %v476, %v475
    %v478 = vmul.f32 0.5, %v477
    %v479 = vsub.f32 1.5, %v478
    %v480 = vmul.f32 %v475, %v479
    %vm481 = vweird.f32 %v474
    %vm482 = vweird.f32 %v475
    %vm483 = vmor %vm481, %vm482
    %v484 = vsel %vm483, %v475, %v480
    %v485 = vmul.f32 %v464, %v484
    %v486 = vperm.slane %v40, 5
    %v487 = vmul.f32 %v485, %v486
    %v488 = vperm.slane %v40, 6
    %v489 = vadd.f32 %v487, %v488
    %v490 = vld [vmem:[%s0] sm:$0x3]
    %v491 = vld [vmem:[#allocation2 + $0x110] sm:$0xff]
    %v492 = vld [vmem:[#allocation2 + $0x118] sm:$0xff]
    %v493 = vld [vmem:[#allocation2 + $0x120] sm:$0xff]
    %v494 = vld [vmem:[#allocation2 + $0x128] sm:$0xff]
    %v495 = vld [vmem:[#allocation2 + $0x130] sm:$0xff]
    %v496 = vld [vmem:[#allocation2 + $0x138] sm:$0xff]
    %v498 = vsel %vm131, %v489, 0
    %500 = vmatpush.msra.mxu0 0.0
    %501 = vmatpush.msra.mxu0 0.0
    %502 = vmatpush.msra.mxu0 0.0
    %503 = vmatpush.msra.mxu0 0.0
    %504 = vmatpush.msra.mxu0 0.0
    %505 = vmatpush.msra.mxu0 0.0
    %506 = vmatpush.msra.mxu0 0.0
    %507 = vmatpush.msra.mxu0 0.0
    %508 = vmatpush.msra.mxu0 0.0
    %509 = vmatpush.msra.mxu0 0.0
    %510 = vmatpush.msra.mxu0 0.0
    %511 = vmatpush.msra.mxu0 0.0
    %512 = vmatpush.msra.mxu0 %v496
    %513 = vmatpush.msra.mxu0 %v495
    %514 = vmatpush.msra.mxu0 %v494
    %515 = vmatpush.msra.mxu0 %v493
    %516 = vmatmul.f32.gmra.mxu0 %v498
    %v517 = vpop.f32.mrf.mxu0
    %v518 = vadd.f32 0.0, %v517
    %519 = vdwg.mxu0
    %vm520 = vcmask 130048
    %v522 = vsel %vm520, %v490, 0
    %524 = vmatpush.msra.mxu0 0.0
    %525 = vmatpush.msra.mxu0 0.0
    %526 = vmatpush.msra.mxu0 0.0
    %527 = vmatpush.msra.mxu0 0.0
    %528 = vmatpush.msra.mxu0 0.0
    %529 = vmatpush.msra.mxu0 0.0
    %530 = vmatpush.msra.mxu0 0.0
    %531 = vmatpush.msra.mxu0 0.0
    %532 = vmatpush.msra.mxu0 0.0
    %533 = vmatpush.msra.mxu0 0.0
    %534 = vmatpush.msra.mxu0 0.0
    %535 = vmatpush.msra.mxu0 0.0
    %536 = vmatpush.msra.mxu0 0.0
    %537 = vmatpush.msra.mxu0 0.0
    %538 = vmatpush.msra.mxu0 %v492
    %539 = vmatpush.msra.mxu0 %v491
    %540 = vmatmul.f32.gmra.mxu0 %v522
    %v541 = vpop.f32.mrf.mxu0
    %v542 = vadd.f32 %v518, %v541
    %543 = vdwg.mxu0
    %v544 = vperm.slane %v40, 7
    %v545 = vadd.f32 %v542, %v544
    %v546 = vmax.f32 %v545, 0.0
    %v547 = vld [vmem:[#allocation2 + $0x140] sm:$0xff]
    %v548 = vld [vmem:[#allocation2 + $0x148] sm:$0xff]
    %v549 = vld [vmem:[#allocation2 + $0x150] sm:$0xff]
    %v550 = vld [vmem:[#allocation2 + $0x158] sm:$0xff]
    %v551 = vld [vmem:[#allocation2 + $0x160] sm:$0xff]
    %v552 = vld [vmem:[#allocation2 + $0x168] sm:$0xff]
    %v553 = vld [vmem:[#allocation2 + $0x170] sm:$0xff]
    %v554 = vld [vmem:[#allocation2 + $0x178] sm:$0xff]
    %v555 = vperm.slane %v41, 0
    %v557 = vsel %vm264, %v546, 0
    %559 = vmatpush.msra.mxu0 0.0
    %560 = vmatpush.msra.mxu0 0.0
    %561 = vmatpush.msra.mxu0 0.0
    %562 = vmatpush.msra.mxu0 0.0
    %563 = vmatpush.msra.mxu0 0.0
    %564 = vmatpush.msra.mxu0 0.0
    %565 = vmatpush.msra.mxu0 0.0
    %566 = vmatpush.msra.mxu0 0.0
    %567 = vmatpush.msra.mxu0 %v554
    %568 = vmatpush.msra.mxu0 %v553
    %569 = vmatpush.msra.mxu0 %v552
    %570 = vmatpush.msra.mxu0 %v551
    %571 = vmatpush.msra.mxu0 %v550
    %572 = vmatpush.msra.mxu0 %v549
    %573 = vmatpush.msra.mxu0 %v548
    %574 = vmatpush.msra.mxu0 %v547
    %575 = vmatmul.f32.gmra.mxu0 %v557
    %v576 = vpop.f32.mrf.mxu0
    %v577 = vadd.f32 %v555, %v576
    %578 = vdwg.mxu0
    %v579 = vmax.f32 %v577, 0.0
    %v580 = vld [vmem:[#allocation2 + $0x180] sm:$0xff]
    %v581 = vld [vmem:[#allocation2 + $0x188] sm:$0xff]
    %v582 = vld [vmem:[#allocation2 + $0x190] sm:$0xff]
    %v583 = vld [vmem:[#allocation2 + $0x198] sm:$0xff]
    %v584 = vld [vmem:[#allocation2 + $0x1a0] sm:$0xff]
    %v585 = vld [vmem:[#allocation2 + $0x1a8] sm:$0xff]
    %v586 = vperm.slane %v41, 1
    %v588 = vsel %vm51, %v579, 0
    %590 = vmatpush.msra.mxu0 0.0
    %591 = vmatpush.msra.mxu0 0.0
    %592 = vmatpush.msra.mxu0 0.0
    %593 = vmatpush.msra.mxu0 0.0
    %594 = vmatpush.msra.mxu0 0.0
    %595 = vmatpush.msra.mxu0 0.0
    %596 = vmatpush.msra.mxu0 0.0
    %597 = vmatpush.msra.mxu0 0.0
    %598 = vmatpush.msra.mxu0 0.0
    %599 = vmatpush.msra.mxu0 0.0
    %600 = vmatpush.msra.mxu0 %v585
    %601 = vmatpush.msra.mxu0 %v584
    %602 = vmatpush.msra.mxu0 %v583
    %603 = vmatpush.msra.mxu0 %v582
    %604 = vmatpush.msra.mxu0 %v581
    %605 = vmatpush.msra.mxu0 %v580
    %606 = vmatmul.f32.gmra.mxu0 %v588
    %v607 = vpop.f32.mrf.mxu0
    %v608 = vadd.f32 %v586, %v607
    %609 = vdwg.mxu0
    %610 = vst.msk [vmem:[#allocation5] sm:$0x3] %vm448, %v608
    // Predicated region
    $region30: #{forward.1} parent=1 // pred_check
      _
    $region31: #{forward.1} parent=1 // pred_check_branch
      %612 = sbr.rel (0) target = $region33
    $region32: #{forward.1} parent=1 // pred_region
      %614 = vsyncadd [#allocation4], 0
      %s616 = sshll.u32 [#allocation5], 4
      %s617 = int_to_ptr.vmem [resolvable:$true] %s616
      %s618 = sshll.u32 %s6, 4
      %s619 = int_to_ptr.hbm [resolvable:$true] %s618
      %621 = dma.vmem_to_hbm [thread:$0]  %s617, 32, %s619, [#allocation4]
    $region33: #{forward.1} parent=1 // pred_fallthru
      _
    // Predicated region
    $region34: #{forward.1} parent=1 // pred_check
      _
    $region35: #{forward.1} parent=1 // pred_check_branch
      %623 = sbr.rel (0) target = $region37
    $region36: #{forward.1} parent=1 // pred_region
      %625 = dma.done [#allocation4], 32
    $region37: #{forward.1} parent=1 // pred_fallthru
      _
    %626 = vsyncpa [#allocation3], 1
    %627 = vsyncpa [#allocation4], 1

</llo_original>
